<compile_context>
chip_gen: v7x
topology: tpu7x:2x2x1
jax: 0.10.0
libtpu: 0.0.40
codegen_flags: <defaults>
</compile_context>

<pallas_src>
import functools

import jax
import jax.numpy as jnp
from jax.experimental import pallas as pl
from jax.experimental.pallas import tpu as pltpu  # noqa: F401  (kept for TODOs above)

EPS = 1e-5
NEG = -1e30  # bias for padded softmax columns -> exp underflows to exactly 0


def _round_up(n, m):
    return ((n + m - 1) // m) * m


def _policy_kernel(x_ref, slab_ref, probs_ref, *, obs_dim, obs_pad, hidden, a_pad):
    H = hidden
    x = x_ref[...].astype(jnp.bfloat16)

    # Static row slices into the packed bf16 slab (zero runtime cost).
    w1 = slab_ref[0:obs_dim, 0:H]
    w2 = slab_ref[obs_pad:obs_pad + H, 0:H]
    w3 = slab_ref[obs_pad + H:obs_pad + 2 * H, 0:a_pad]
    r = obs_pad + 2 * H
    g1 = slab_ref[r + 0:r + 1, 0:H].astype(jnp.float32)
    be1 = slab_ref[r + 1:r + 2, 0:H].astype(jnp.float32)
    g2 = slab_ref[r + 2:r + 3, 0:H].astype(jnp.float32)
    be2 = slab_ref[r + 3:r + 4, 0:H].astype(jnp.float32)
    b3 = slab_ref[r + 4:r + 5, 0:a_pad].astype(jnp.float32)

    # ---- layer1 + bn1(train) + relu -------------------------------------
    # Linear bias omitted: BN mean-subtraction cancels any per-feature shift.
    h = jnp.dot(x, w1, preferred_element_type=jnp.float32)
    mu = jnp.mean(h, axis=0, keepdims=True)
    d = h - mu
    var = jnp.mean(d * d, axis=0, keepdims=True)          # biased, two-pass
    h = jnp.maximum(d * (g1 * jax.lax.rsqrt(var + EPS)) + be1, 0.0)

    # ---- layer2 + bn2(train) + relu -------------------------------------
    h = jnp.dot(h.astype(jnp.bfloat16), w2, preferred_element_type=jnp.float32)
    mu = jnp.mean(h, axis=0, keepdims=True)
    d = h - mu
    var = jnp.mean(d * d, axis=0, keepdims=True)
    h = jnp.maximum(d * (g2 * jax.lax.rsqrt(var + EPS)) + be2, 0.0)

    # ---- layer3 (lane-padded) + softmax(dim=1) ---------------------------
    # Padded columns have zero weights and -1e30 bias -> exp == 0, so they do
    # not perturb the softmax over the real action columns.
    logits = jnp.dot(h.astype(jnp.bfloat16), w3, preferred_element_type=jnp.float32) + b3
    m = jnp.max(logits, axis=1, keepdims=True)
    e = jnp.exp(logits - m)
    denom = jnp.sum(e, axis=1, keepdims=True)
    probs_ref[...] = (e / denom).astype(probs_ref.dtype)   # exact divide: rows sum to 1


def prepare_params(params):
    """One-time packing of all weights/params into a single bf16 slab.

    Call once and cache the result alongside the weights; discrete_policy_net
    then does zero per-call parameter work.
    """
    obs_dim, H = params["w1"].shape
    A = params["w3"].shape[1]
    A_pad = max(128, _round_up(A, 128))          # lane-dense output width
    W = max(H, A_pad)
    obs_pad = _round_up(obs_dim, 8)              # keep w2/w3 sublane-aligned

    rows = obs_pad + 2 * H + 8
    slab = jnp.zeros((rows, W), jnp.float32)
    slab = slab.at[:obs_dim, :H].set(params["w1"])
    slab = slab.at[obs_pad:obs_pad + H, :H].set(params["w2"])
    slab = slab.at[obs_pad + H:obs_pad + 2 * H, :A].set(params["w3"])
    r = obs_pad + 2 * H
    slab = slab.at[r + 0, :H].set(params["g1"].reshape(-1))
    slab = slab.at[r + 1, :H].set(params["be1"].reshape(-1))
    slab = slab.at[r + 2, :H].set(params["g2"].reshape(-1))
    slab = slab.at[r + 3, :H].set(params["be2"].reshape(-1))
    b3_row = jnp.full((W,), NEG, jnp.float32).at[:A].set(params["b3"].reshape(-1))
    slab = slab.at[r + 4, :].set(b3_row)

    # bf16 storage: halves weight DMA bytes, native MXU bf16 path (f32 accumulate).
    slab = slab.astype(jnp.bfloat16)
    meta = dict(obs_dim=obs_dim, obs_pad=obs_pad, hidden=H,
                num_actions=A, a_pad=A_pad, width=W)
    return slab, meta


def discrete_policy_net(x, slab, meta):
    """x: (B, obs_dim) f32. Returns action probabilities (B, num_actions)."""
    B, obs_dim = x.shape
    assert obs_dim == meta["obs_dim"]
    # Training-mode BatchNorm1d degenerates for B == 1 (PyTorch raises too).
    assert B > 1, "DiscretePolicyNet (training-mode BN) requires batch > 1"

    H, A, A_pad = meta["hidden"], meta["num_actions"], meta["a_pad"]

    flops = 2 * B * (obs_dim * H + H * H + H * A_pad)
    bytes_accessed = 4 * x.size + 2 * slab.size + 4 * B * A_pad
    cost = pl.CostEstimate(flops=flops,
                           transcendentals=B * A_pad,
                           bytes_accessed=bytes_accessed)

    kernel = functools.partial(_policy_kernel,
                               obs_dim=obs_dim, obs_pad=meta["obs_pad"],
                               hidden=H, a_pad=A_pad)

    # Tiny, latency-bound problem: one grid point, every array a single
    # full-extent block resident in VMEM; all three matmuls + both batch-norm
    # reductions + the softmax run inside one kernel with 2 input DMAs.
    probs_pad = pl.pallas_call(
        kernel,
        out_shape=jax.ShapeDtypeStruct((B, A_pad), jnp.float32),
        grid=(),
        in_specs=[pl.BlockSpec(x.shape, lambda: (0, 0)),
                  pl.BlockSpec(slab.shape, lambda: (0, 0))],
        out_specs=pl.BlockSpec((B, A_pad), lambda: (0, 0)),
        cost_estimate=cost,
    )(x, slab)

    return probs_pad[:, :A]


def init_params(key, obs_dim, num_actions, hidden=128):
    """Deterministic synthetic parameters (shapes match the PyTorch module)."""
    ks = jax.random.split(key, 3)

    def lin(k, fan_in, fan_out):
        bound = 1.0 / jnp.sqrt(fan_in)
        kw, kb = jax.random.split(k)
        w = jax.random.uniform(kw, (fan_in, fan_out), jnp.float32, -bound, bound)
        b = jax.random.uniform(kb, (1, fan_out), jnp.float32, -bound, bound)
        return w, b

    w1, b1 = lin(ks[0], obs_dim, hidden)
    w2, b2 = lin(ks[1], hidden, hidden)
    w3, b3 = lin(ks[2], hidden, num_actions)
    return dict(
        w1=w1, b1=b1,
        g1=jnp.ones((1, hidden), jnp.float32), be1=jnp.zeros((1, hidden), jnp.float32),
        w2=w2, b2=b2,
        g2=jnp.ones((1, hidden), jnp.float32), be2=jnp.zeros((1, hidden), jnp.float32),
        w3=w3, b3=b3,
    )


def reference_forward(x, p):
    """Pure-JAX f32 reference of the PyTorch module (training-mode BN)."""
    def bn(h, g, be):
        mu = jnp.mean(h, axis=0, keepdims=True)
        var = jnp.mean((h - mu) ** 2, axis=0, keepdims=True)
        return (h - mu) * jax.lax.rsqrt(var + EPS) * g + be

    h = jnp.maximum(bn(x @ p["w1"] + p["b1"], p["g1"], p["be1"]), 0.0)
    h = jnp.maximum(bn(h @ p["w2"] + p["b2"], p["g2"], p["be2"]), 0.0)
    logits = h @ p["w3"] + p["b3"]
    return jax.nn.softmax(logits, axis=1)


if __name__ == "__main__":
    key = jax.random.PRNGKey(0)
    k_x, k_p = jax.random.split(key)

    B, OBS_DIM, NUM_ACTIONS = 8, 16, 8
    x = jax.random.normal(k_x, (B, OBS_DIM), jnp.float32)
    params = init_params(k_p, OBS_DIM, NUM_ACTIONS)

    slab, meta = prepare_params(params)          # one-time packing (cache this)
    probs = discrete_policy_net(x, slab, meta)
    probs = jax.block_until_ready(probs)

    # sanity: rows of a Categorical parameter must sum to 1 (exact divide now)
    row_sums = jnp.sum(probs, axis=1)
    assert probs.shape == (B, NUM_ACTIONS)
    assert bool(jnp.all(probs >= 0.0))
    assert bool(jnp.all(jnp.abs(row_sums - 1.0) < 1e-4))

    # cross-check against the pure-JAX f32 reference (bf16 weights -> loose tol)
    ref = reference_forward(x, params)
    assert bool(jnp.allclose(probs, ref, atol=1e-2))

    print("KERNEL_OK")
</pallas_src>

<mosaic_0001>
module attributes {stable_mosaic.version = 11 : i64} {
  func.func @_policy_kernel(%arg0: memref<8x16xf32, #tpu.memory_space<vmem>>, %arg1: memref<280x128xbf16, #tpu.memory_space<vmem>>, %arg2: memref<8x128xf32, #tpu.memory_space<vmem>>) attributes {dimension_semantics = [], scalar_prefetch = 0 : i64, scratch_operands = 0 : i64, tpu.core_type = #tpu.core_type<tc>} {
    %c0 = arith.constant 0 : index
    %c0_0 = arith.constant 0 : index
    %0 = vector.load %arg0[%c0, %c0_0] : memref<8x16xf32, #tpu.memory_space<vmem>>, vector<8x16xf32>
    %1 = arith.truncf %0 : vector<8x16xf32> to vector<8x16xbf16>
    %c0_1 = arith.constant 0 : index
    %c0_2 = arith.constant 0 : index
    %2 = vector.load %arg1[%c0_1, %c0_2] : memref<280x128xbf16, #tpu.memory_space<vmem>>, vector<16x128xbf16>
    %c16 = arith.constant 16 : index
    %c0_3 = arith.constant 0 : index
    %3 = vector.load %arg1[%c16, %c0_3] : memref<280x128xbf16, #tpu.memory_space<vmem>>, vector<128x128xbf16>
    %c144 = arith.constant 144 : index
    %c0_4 = arith.constant 0 : index
    %4 = vector.load %arg1[%c144, %c0_4] : memref<280x128xbf16, #tpu.memory_space<vmem>>, vector<128x128xbf16>
    %c272 = arith.constant 272 : index
    %c0_5 = arith.constant 0 : index
    %5 = vector.load %arg1[%c272, %c0_5] : memref<280x128xbf16, #tpu.memory_space<vmem>>, vector<1x128xbf16>
    %6 = arith.extf %5 : vector<1x128xbf16> to vector<1x128xf32>
    %c273 = arith.constant 273 : index
    %c0_6 = arith.constant 0 : index
    %7 = vector.load %arg1[%c273, %c0_6] : memref<280x128xbf16, #tpu.memory_space<vmem>>, vector<1x128xbf16>
    %8 = arith.extf %7 : vector<1x128xbf16> to vector<1x128xf32>
    %c274 = arith.constant 274 : index
    %c0_7 = arith.constant 0 : index
    %9 = vector.load %arg1[%c274, %c0_7] : memref<280x128xbf16, #tpu.memory_space<vmem>>, vector<1x128xbf16>
    %10 = arith.extf %9 : vector<1x128xbf16> to vector<1x128xf32>
    %c275 = arith.constant 275 : index
    %c0_8 = arith.constant 0 : index
    %11 = vector.load %arg1[%c275, %c0_8] : memref<280x128xbf16, #tpu.memory_space<vmem>>, vector<1x128xbf16>
    %12 = arith.extf %11 : vector<1x128xbf16> to vector<1x128xf32>
    %c276 = arith.constant 276 : index
    %c0_9 = arith.constant 0 : index
    %13 = vector.load %arg1[%c276, %c0_9] : memref<280x128xbf16, #tpu.memory_space<vmem>>, vector<1x128xbf16>
    %14 = arith.extf %13 : vector<1x128xbf16> to vector<1x128xf32>
    %cst = arith.constant dense<0.000000e+00> : vector<8x128xf32>
    %15 = tpu.matmul %1, %2, %cst {dimension_numbers = #tpu.dot_dimension_numbers<[1], [0], [0], [1], [0, 0, 1, 1], [], []>} : vector<8x16xbf16>, vector<16x128xbf16>, vector<8x128xf32> -> vector<8x128xf32>
    %cst_10 = arith.constant dense<0.000000e+00> : vector<128xf32>
    %16 = vector.multi_reduction <add>, %15, %cst_10 [0] : vector<8x128xf32> to vector<128xf32>
    %17 = vector.shape_cast %16 : vector<128xf32> to vector<1x128xf32>
    %cst_11 = arith.constant 8.000000e+00 : f32
    %18 = vector.broadcast %cst_11 : f32 to vector<1x128xf32>
    %19 = arith.divf %17, %18 : vector<1x128xf32>
    %20 = vector.broadcast %19 : vector<1x128xf32> to vector<8x128xf32>
    %21 = arith.subf %15, %20 : vector<8x128xf32>
    %22 = arith.mulf %21, %21 : vector<8x128xf32>
    %cst_12 = arith.constant dense<0.000000e+00> : vector<128xf32>
    %23 = vector.multi_reduction <add>, %22, %cst_12 [0] : vector<8x128xf32> to vector<128xf32>
    %24 = vector.shape_cast %23 : vector<128xf32> to vector<1x128xf32>
    %cst_13 = arith.constant 8.000000e+00 : f32
    %25 = vector.broadcast %cst_13 : f32 to vector<1x128xf32>
    %26 = arith.divf %24, %25 : vector<1x128xf32>
    %cst_14 = arith.constant 9.99999974E-6 : f32
    %27 = vector.broadcast %cst_14 : f32 to vector<1x128xf32>
    %28 = arith.addf %26, %27 : vector<1x128xf32>
    %29 = math.rsqrt %28 : vector<1x128xf32>
    %30 = arith.mulf %6, %29 : vector<1x128xf32>
    %31 = vector.broadcast %30 : vector<1x128xf32> to vector<8x128xf32>
    %32 = arith.mulf %21, %31 : vector<8x128xf32>
    %33 = vector.broadcast %8 : vector<1x128xf32> to vector<8x128xf32>
    %34 = arith.addf %32, %33 : vector<8x128xf32>
    %cst_15 = arith.constant 0.000000e+00 : f32
    %35 = vector.broadcast %cst_15 : f32 to vector<8x128xf32>
    %36 = arith.maximumf %34, %35 : vector<8x128xf32>
    %37 = arith.truncf %36 : vector<8x128xf32> to vector<8x128xbf16>
    %cst_16 = arith.constant dense<0.000000e+00> : vector<8x128xf32>
    %38 = tpu.matmul %37, %3, %cst_16 {dimension_numbers = #tpu.dot_dimension_numbers<[1], [0], [0], [1], [0, 0, 1, 1], [], []>} : vector<8x128xbf16>, vector<128x128xbf16>, vector<8x128xf32> -> vector<8x128xf32>
    %cst_17 = arith.constant dense<0.000000e+00> : vector<128xf32>
    %39 = vector.multi_reduction <add>, %38, %cst_17 [0] : vector<8x128xf32> to vector<128xf32>
    %40 = vector.shape_cast %39 : vector<128xf32> to vector<1x128xf32>
    %cst_18 = arith.constant 8.000000e+00 : f32
    %41 = vector.broadcast %cst_18 : f32 to vector<1x128xf32>
    %42 = arith.divf %40, %41 : vector<1x128xf32>
    %43 = vector.broadcast %42 : vector<1x128xf32> to vector<8x128xf32>
    %44 = arith.subf %38, %43 : vector<8x128xf32>
    %45 = arith.mulf %44, %44 : vector<8x128xf32>
    %cst_19 = arith.constant dense<0.000000e+00> : vector<128xf32>
    %46 = vector.multi_reduction <add>, %45, %cst_19 [0] : vector<8x128xf32> to vector<128xf32>
    %47 = vector.shape_cast %46 : vector<128xf32> to vector<1x128xf32>
    %cst_20 = arith.constant 8.000000e+00 : f32
    %48 = vector.broadcast %cst_20 : f32 to vector<1x128xf32>
    %49 = arith.divf %47, %48 : vector<1x128xf32>
    %cst_21 = arith.constant 9.99999974E-6 : f32
    %50 = vector.broadcast %cst_21 : f32 to vector<1x128xf32>
    %51 = arith.addf %49, %50 : vector<1x128xf32>
    %52 = math.rsqrt %51 : vector<1x128xf32>
    %53 = arith.mulf %10, %52 : vector<1x128xf32>
    %54 = vector.broadcast %53 : vector<1x128xf32> to vector<8x128xf32>
    %55 = arith.mulf %44, %54 : vector<8x128xf32>
    %56 = vector.broadcast %12 : vector<1x128xf32> to vector<8x128xf32>
    %57 = arith.addf %55, %56 : vector<8x128xf32>
    %cst_22 = arith.constant 0.000000e+00 : f32
    %58 = vector.broadcast %cst_22 : f32 to vector<8x128xf32>
    %59 = arith.maximumf %57, %58 : vector<8x128xf32>
    %60 = arith.truncf %59 : vector<8x128xf32> to vector<8x128xbf16>
    %cst_23 = arith.constant dense<0.000000e+00> : vector<8x128xf32>
    %61 = tpu.matmul %60, %4, %cst_23 {dimension_numbers = #tpu.dot_dimension_numbers<[1], [0], [0], [1], [0, 0, 1, 1], [], []>} : vector<8x128xbf16>, vector<128x128xbf16>, vector<8x128xf32> -> vector<8x128xf32>
    %62 = vector.broadcast %14 : vector<1x128xf32> to vector<8x128xf32>
    %63 = arith.addf %61, %62 : vector<8x128xf32>
    %cst_24 = arith.constant dense<0xFF800000> : vector<8xf32>
    %64 = vector.multi_reduction <maximumf>, %63, %cst_24 [1] : vector<8x128xf32> to vector<8xf32>
    %65 = vector.shape_cast %64 : vector<8xf32> to vector<8x1xf32>
    %66 = vector.broadcast %65 : vector<8x1xf32> to vector<8x128xf32>
    %67 = arith.subf %63, %66 : vector<8x128xf32>
    %68 = math.exp %67 : vector<8x128xf32>
    %cst_25 = arith.constant dense<0.000000e+00> : vector<8xf32>
    %69 = vector.multi_reduction <add>, %68, %cst_25 [1] : vector<8x128xf32> to vector<8xf32>
    %70 = vector.shape_cast %69 : vector<8xf32> to vector<8x1xf32>
    %71 = vector.broadcast %70 : vector<8x1xf32> to vector<8x128xf32>
    %72 = arith.divf %68, %71 : vector<8x128xf32>
    %c0_26 = arith.constant 0 : index
    %c0_27 = arith.constant 0 : index
    %73 = vector.load %arg2[%c0_26, %c0_27] : memref<8x128xf32, #tpu.memory_space<vmem>>, vector<8x128xf32>
    tpu.vector_store %arg2[%c0_26, %c0_27], %72 {strides = array<i32>} : memref<8x128xf32, #tpu.memory_space<vmem>>, vector<8x128xf32>,
    return
  }
}

</mosaic_0001>

<llo_original>
// kernel: tpu_custom_call.1
$region0: #{tpu_custom_call.1}
  #allocation0 [shape = 'u32[]', space=smem, size = 0x4, offset = 0x4, fixed_abs, tag = 'smem constant byte address 0x4 - core index']
  #allocation1 [shape = 'u32[144,128]{1,0:T(1,128)}', space=vmem, size = 0x12000, scoped, tag = 'internal scratch']
  %s0 = inlined_call_operand.hbm [shape: f32[8,16], index: 0, kind: input, shape index: {}]
  %s1 = inlined_call_operand.hbm [shape: bf16[280,128], index: 1, kind: input, shape index: {}]
  %s2 = inlined_call_operand.hbm [shape: f32[8,128], index: 2, kind: output, shape index: {}]
  %s3 = sld [smem:[#allocation0]]
  $region26: #{tpu_custom_call.1} parent=0
    _
  %s5 = ssub.s32 1, %s3
  %s6 = scalar_select 0, %s5, %s3
  $region1: #{tpu_custom_call.1} parent=0
    #allocation2 [shape = 'u8[4096]{0}', space=vmem, size = 0x1000, scoped, tag = 'input window, operand 0, single buffered']
    #allocation3 [shape = 's32[1]{0}', space=sflag, size = 0x4, scoped, tag = 'scoped memory for tpu_custom_call.1']
    #allocation4 [shape = 's32[1]{0}', space=sflag, size = 0x4, scoped, tag = 'scoped memory for tpu_custom_call.1']
    #allocation5 [shape = 'u8[71680]{0}', space=vmem, size = 0x11800, scoped, tag = 'input window, operand 1, single buffered']
    #allocation6 [shape = 's32[1]{0}', space=sflag, size = 0x4, scoped, tag = 'scoped memory for tpu_custom_call.1']
    #allocation7 [shape = 'u8[4096]{0}', space=vmem, size = 0x1000, scoped, tag = 'output window, operand 0, single buffered']
    %7 = vsyncpa [#allocation3], 0
    %8 = vsyncpa [#allocation6], 0
    %9 = vsyncpa [#allocation4], 0
    // Predicated region
    $region2: #{tpu_custom_call.1} parent=1 // pred_check
      _
    $region3: #{tpu_custom_call.1} parent=1 // pred_check_branch
      %11 = sbr.rel (0) target = $region5
    $region4: #{tpu_custom_call.1} parent=1 // pred_region
      %s13 = ssub.s32 128, 128
      %14 = vsyncadd [#allocation3], %s13
      %s16 = sshll.u32 [#allocation2], 4
      %s17 = int_to_ptr.vmem [resolvable:$true] %s16
      %19 = dma.hbm_to_vmem [thread:$0]  %s0, 128, %s17, [#allocation3]
    $region5: #{tpu_custom_call.1} parent=1 // pred_fallthru
      _
    // Predicated region
    $region6: #{tpu_custom_call.1} parent=1 // pred_check
      _
    $region7: #{tpu_custom_call.1} parent=1 // pred_check_branch
      %21 = sbr.rel (0) target = $region9
    $region8: #{tpu_custom_call.1} parent=1 // pred_region
      %s23 = ssub.s32 2240, 2240
      %24 = vsyncadd [#allocation6], %s23
      %s25 = sshll.u32 [#allocation5], 4
      %s26 = int_to_ptr.vmem [resolvable:$true] %s25
      %31 = dma.hbm_to_vmem [thread:$0]  %s1, 2240, %s26, [#allocation6], 64, 64, 4
    $region9: #{tpu_custom_call.1} parent=1 // pred_fallthru
      _
    // Predicated region
    $region10: #{tpu_custom_call.1} parent=1 // pred_check
      _
    $region11: #{tpu_custom_call.1} parent=1 // pred_check_branch
      %33 = sbr.rel (0) target = $region13
    $region12: #{tpu_custom_call.1} parent=1 // pred_region
      %34 = dma.done [#allocation3], 128
    $region13: #{tpu_custom_call.1} parent=1 // pred_fallthru
      _
    // Predicated region
    $region14: #{tpu_custom_call.1} parent=1 // pred_check
      _
    $region15: #{tpu_custom_call.1} parent=1 // pred_check_branch
      %36 = sbr.rel (0) target = $region17
    $region16: #{tpu_custom_call.1} parent=1 // pred_region
      %37 = dma.done [#allocation6], 2240
    $region17: #{tpu_custom_call.1} parent=1 // pred_fallthru
      _
    %v39 = vld [vmem:[#allocation2] sm:$0xff]
    %v40 = vpack.c.bf16 %v39, %v39
    %v41 = vld [vmem:[#allocation5] sm:$0xf]
    %v42 = vld [vmem:[#allocation5 + $0x4] sm:$0xf]
    %v43 = vld [vmem:[#allocation5 + $0x8] sm:$0xf]
    %v44 = vld [vmem:[#allocation5 + $0xc] sm:$0xf]
    %v45 = vld [vmem:[#allocation5 + $0x10] sm:$0xf]
    %v46 = vld [vmem:[#allocation5 + $0x14] sm:$0xf]
    %v47 = vld [vmem:[#allocation5 + $0x18] sm:$0xf]
    %v48 = vld [vmem:[#allocation5 + $0x1c] sm:$0xf]
    %v49 = vld [vmem:[#allocation5 + $0x20] sm:$0xf]
    %v50 = vld [vmem:[#allocation5 + $0x24] sm:$0xf]
    %v51 = vld [vmem:[#allocation5 + $0x28] sm:$0xf]
    %v52 = vld [vmem:[#allocation5 + $0x2c] sm:$0xf]
    %v53 = vld [vmem:[#allocation5 + $0x30] sm:$0xf]
    %v54 = vld [vmem:[#allocation5 + $0x34] sm:$0xf]
    %v55 = vld [vmem:[#allocation5 + $0x38] sm:$0xf]
    %v56 = vld [vmem:[#allocation5 + $0x3c] sm:$0xf]
    %v57 = vld [vmem:[#allocation5 + $0x40] sm:$0xf]
    %v58 = vld [vmem:[#allocation5 + $0x44] sm:$0xf]
    %v59 = vld [vmem:[#allocation5 + $0x48] sm:$0xf]
    %v60 = vld [vmem:[#allocation5 + $0x4c] sm:$0xf]
    %v61 = vld [vmem:[#allocation5 + $0x50] sm:$0xf]
    %v62 = vld [vmem:[#allocation5 + $0x54] sm:$0xf]
    %v63 = vld [vmem:[#allocation5 + $0x58] sm:$0xf]
    %v64 = vld [vmem:[#allocation5 + $0x5c] sm:$0xf]
    %v65 = vld [vmem:[#allocation5 + $0x60] sm:$0xf]
    %v66 = vld [vmem:[#allocation5 + $0x64] sm:$0xf]
    %v67 = vld [vmem:[#allocation5 + $0x68] sm:$0xf]
    %v68 = vld [vmem:[#allocation5 + $0x6c] sm:$0xf]
    %v69 = vld [vmem:[#allocation5 + $0x70] sm:$0xf]
    %v70 = vld [vmem:[#allocation5 + $0x74] sm:$0xf]
    %v71 = vld [vmem:[#allocation5 + $0x78] sm:$0xf]
    %v72 = vld [vmem:[#allocation5 + $0x7c] sm:$0xf]
    %v73 = vld [vmem:[#allocation5 + $0x80] sm:$0xf]
    %v74 = vld [vmem:[#allocation5 + $0x84] sm:$0xf]
    %v75 = vld [vmem:[#allocation5 + $0x88] sm:$0x1]
    %v76 = vunpack.c.l.bf16 %v75
    %v77 = vld [vmem:[#allocation5 + $0x88] sm:$0x2]
    %v78 = vunpack.c.l.bf16 %v77
    %v79 = vld [vmem:[#allocation5 + $0x88] sm:$0x4]
    %v80 = vunpack.c.l.bf16 %v79
    %v83 = vunpack.c.l.b16 %v41
    %v84 = vunpack.c.l.b16 %v42
    %v85 = vpack.c.b16 %v84, %v83
    %vm87 = vcmask 130048
    %v89 = vsel %vm87, %v40, 0
    %91 = vmatprep.subr.bf16.mxu0 0
    %92 = vmatpush1.bf16.msra.mxu0 %v85
    %93 = vmatprep.subr.bf16.mxu0 0
    %94 = vmatpush1.bf16.msra.mxu0 0
    %95 = vmatprep.subr.bf16.mxu0 0
    %96 = vmatpush1.bf16.msra.mxu0 0
    %97 = vmatprep.subr.bf16.mxu0 0
    %98 = vmatpush1.bf16.msra.mxu0 0
    %99 = vmatprep.subr.bf16.mxu0 0
    %100 = vmatpush1.bf16.msra.mxu0 0
    %101 = vmatprep.subr.bf16.mxu0 0
    %102 = vmatpush1.bf16.msra.mxu0 0
    %103 = vmatprep.subr.bf16.mxu0 0
    %104 = vmatpush1.bf16.msra.mxu0 0
    %105 = vmatprep.subr.bf16.mxu0 0
    %106 = vmatpush1.bf16.msra.mxu0 0
    %107 = vmatprep.subr.bf16.mxu0 0
    %108 = vmatpush1.bf16.msra.mxu0 0
    %109 = vmatprep.subr.bf16.mxu0 0
    %110 = vmatpush1.bf16.msra.mxu0 0
    %111 = vmatprep.subr.bf16.mxu0 0
    %112 = vmatpush1.bf16.msra.mxu0 0
    %113 = vmatprep.subr.bf16.mxu0 0
    %114 = vmatpush1.bf16.msra.mxu0 0
    %115 = vmatprep.subr.bf16.mxu0 0
    %116 = vmatpush1.bf16.msra.mxu0 0
    %117 = vmatprep.subr.bf16.mxu0 0
    %118 = vmatpush1.bf16.msra.mxu0 0
    %119 = vmatprep.subr.bf16.mxu0 0
    %120 = vmatpush1.bf16.msra.mxu0 0
    %121 = vmatprep.subr.bf16.mxu0 0
    %122 = vmatpush1.bf16.msra.mxu0 0
    %123 = vmatprep.mubr.bf16.mxu0 0
    %124 = vmatmul.mubr.bf16.gmra.mrb[0].mxu0 %v89
    %v125 = vpop.f32.mrb[0].mxu0
    %v126 = vadd.f32 0.0, %v125
    %v127 = vpop.f32.mrb[0].mxu0
    %v128 = vpop.f32.mrb[0].mxu0
    %v129 = vpop.f32.mrb[0].mxu0
    %130 = vdwg.mxu0
    %v131 = vrot.slane %v126, 4
    %v132 = vadd.f32 %v126, %v131
    %v133 = vrot.slane %v132, 2
    %v134 = vadd.f32 %v132, %v133
    %v135 = vrot.slane %v134, 1
    %v136 = vadd.f32 %v134, %v135
    %v137 = vrcp.pop 8.0
    %v138 = vmul.f32 %v136, %v137
    %v139 = vsub.f32 %v126, %v138
    %v140 = vmul.f32 %v139, %v139
    %v141 = vrot.slane %v140, 4
    %v142 = vadd.f32 %v140, %v141
    %v143 = vrot.slane %v142, 2
    %v144 = vadd.f32 %v142, %v143
    %v145 = vrot.slane %v144, 1
    %v146 = vadd.f32 %v144, %v145
    %v147 = vmul.f32 %v146, %v137
    %v148 = vadd.f32 %v147, 1e-05
    %v149 = vrsqrt.pop %v148
    %v150 = vmul.f32 %v76, %v149
    %v151 = vlaneseq
    %v152 = vshrl.u32 %v151, 7
    %v153 = vsub.s32 0, %v152
    %v154 = vrot.slane %v150, %v153
    %v155 = vmul.f32 %v139, %v154
    %v156 = vlaneseq
    %v157 = vshrl.u32 %v156, 7
    %v158 = vsub.s32 1, %v157
    %v159 = vrot.slane %v76, %v158
    %v160 = vadd.f32 %v155, %v159
    %v161 = vmax.f32 %v160, 0.0
    %v162 = vpack.c.bf16 %v161, %v161
    %v179 = vunpack.c.l.b16 %v43
    %v180 = vunpack.c.l.b16 %v44
    %v181 = vunpack.c.l.b16 %v45
    %v182 = vunpack.c.l.b16 %v46
    %v183 = vunpack.c.l.b16 %v47
    %v184 = vunpack.c.l.b16 %v48
    %v185 = vunpack.c.l.b16 %v49
    %v186 = vunpack.c.l.b16 %v50
    %v187 = vunpack.c.l.b16 %v51
    %v188 = vunpack.c.l.b16 %v52
    %v189 = vunpack.c.l.b16 %v53
    %v190 = vunpack.c.l.b16 %v54
    %v191 = vunpack.c.l.b16 %v55
    %v192 = vunpack.c.l.b16 %v56
    %v193 = vunpack.c.l.b16 %v57
    %v194 = vunpack.c.l.b16 %v58
    %v195 = vpack.c.b16 %v180, %v179
    %v196 = vpack.c.b16 %v182, %v181
    %v197 = vpack.c.b16 %v184, %v183
    %v198 = vpack.c.b16 %v186, %v185
    %v199 = vpack.c.b16 %v188, %v187
    %v200 = vpack.c.b16 %v190, %v189
    %v201 = vpack.c.b16 %v192, %v191
    %v202 = vpack.c.b16 %v194, %v193
    %211 = vmatprep.subr.bf16.mxu0 0
    %212 = vmatpush1.bf16.msra.mxu0 %v195
    %213 = vmatprep.subr.bf16.mxu0 0
    %214 = vmatpush1.bf16.msra.mxu0 %v196
    %215 = vmatprep.subr.bf16.mxu0 0
    %216 = vmatpush1.bf16.msra.mxu0 %v197
    %217 = vmatprep.subr.bf16.mxu0 0
    %218 = vmatpush1.bf16.msra.mxu0 %v198
    %219 = vmatprep.subr.bf16.mxu0 0
    %220 = vmatpush1.bf16.msra.mxu0 %v199
    %221 = vmatprep.subr.bf16.mxu0 0
    %222 = vmatpush1.bf16.msra.mxu0 %v200
    %223 = vmatprep.subr.bf16.mxu0 0
    %224 = vmatpush1.bf16.msra.mxu0 %v201
    %225 = vmatprep.subr.bf16.mxu0 0
    %226 = vmatpush1.bf16.msra.mxu0 %v202
    %227 = vmatprep.subr.bf16.mxu0 0
    %228 = vmatpush1.bf16.msra.mxu0 0
    %229 = vmatprep.subr.bf16.mxu0 0
    %230 = vmatpush1.bf16.msra.mxu0 0
    %231 = vmatprep.subr.bf16.mxu0 0
    %232 = vmatpush1.bf16.msra.mxu0 0
    %233 = vmatprep.subr.bf16.mxu0 0
    %234 = vmatpush1.bf16.msra.mxu0 0
    %235 = vmatprep.subr.bf16.mxu0 0
    %236 = vmatpush1.bf16.msra.mxu0 0
    %237 = vmatprep.subr.bf16.mxu0 0
    %238 = vmatpush1.bf16.msra.mxu0 0
    %239 = vmatprep.subr.bf16.mxu0 0
    %240 = vmatpush1.bf16.msra.mxu0 0
    %241 = vmatprep.subr.bf16.mxu0 0
    %242 = vmatpush1.bf16.msra.mxu0 0
    %243 = vmatprep.mubr.bf16.mxu0 0
    %244 = vmatmul.mubr.bf16.gmra.mrb[0].mxu0 %v162
    %v245 = vpop.f32.mrb[0].mxu0
    %v246 = vadd.f32 0.0, %v245
    %v247 = vpop.f32.mrb[0].mxu0
    %v248 = vpop.f32.mrb[0].mxu0
    %v249 = vpop.f32.mrb[0].mxu0
    %250 = vdwg.mxu0
    %v251 = vrot.slane %v246, 4
    %v252 = vadd.f32 %v246, %v251
    %v253 = vrot.slane %v252, 2
    %v254 = vadd.f32 %v252, %v253
    %v255 = vrot.slane %v254, 1
    %v256 = vadd.f32 %v254, %v255
    %v257 = vmul.f32 %v256, %v137
    %v258 = vsub.f32 %v246, %v257
    %v259 = vmul.f32 %v258, %v258
    %v260 = vrot.slane %v259, 4
    %v261 = vadd.f32 %v259, %v260
    %v262 = vrot.slane %v261, 2
    %v263 = vadd.f32 %v261, %v262
    %v264 = vrot.slane %v263, 1
    %v265 = vadd.f32 %v263, %v264
    %v266 = vmul.f32 %v265, %v137
    %v267 = vadd.f32 %v266, 1e-05
    %v268 = vrsqrt.pop %v267
    %v269 = vmul.f32 %v78, %v268
    %v270 = vlaneseq
    %v271 = vshrl.u32 %v270, 7
    %v272 = vsub.s32 2, %v271
    %v273 = vrot.slane %v269, %v272
    %v274 = vmul.f32 %v258, %v273
    %v275 = vlaneseq
    %v276 = vshrl.u32 %v275, 7
    %v277 = vsub.s32 3, %v276
    %v278 = vrot.slane %v78, %v277
    %v279 = vadd.f32 %v274, %v278
    %v280 = vmax.f32 %v279, 0.0
    %v281 = vpack.c.bf16 %v280, %v280
    %v282 = vlaneseq
    %v283 = vshrl.u32 %v282, 7
    %v284 = vsub.s32 4, %v283
    %v285 = vrot.slane %v80, %v284
    %v302 = vunpack.c.l.b16 %v59
    %v303 = vunpack.c.l.b16 %v60
    %v304 = vunpack.c.l.b16 %v61
    %v305 = vunpack.c.l.b16 %v62
    %v306 = vunpack.c.l.b16 %v63
    %v307 = vunpack.c.l.b16 %v64
    %v308 = vunpack.c.l.b16 %v65
    %v309 = vunpack.c.l.b16 %v66
    %v310 = vunpack.c.l.b16 %v67
    %v311 = vunpack.c.l.b16 %v68
    %v312 = vunpack.c.l.b16 %v69
    %v313 = vunpack.c.l.b16 %v70
    %v314 = vunpack.c.l.b16 %v71
    %v315 = vunpack.c.l.b16 %v72
    %v316 = vunpack.c.l.b16 %v73
    %v317 = vunpack.c.l.b16 %v74
    %v318 = vpack.c.b16 %v303, %v302
    %v319 = vpack.c.b16 %v305, %v304
    %v320 = vpack.c.b16 %v307, %v306
    %v321 = vpack.c.b16 %v309, %v308
    %v322 = vpack.c.b16 %v311, %v310
    %v323 = vpack.c.b16 %v313, %v312
    %v324 = vpack.c.b16 %v315, %v314
    %v325 = vpack.c.b16 %v317, %v316
    %334 = vmatprep.subr.bf16.mxu0 0
    %335 = vmatpush1.bf16.msra.mxu0 %v318
    %336 = vmatprep.subr.bf16.mxu0 0
    %337 = vmatpush1.bf16.msra.mxu0 %v319
    %338 = vmatprep.subr.bf16.mxu0 0
    %339 = vmatpush1.bf16.msra.mxu0 %v320
    %340 = vmatprep.subr.bf16.mxu0 0
    %341 = vmatpush1.bf16.msra.mxu0 %v321
    %342 = vmatprep.subr.bf16.mxu0 0
    %343 = vmatpush1.bf16.msra.mxu0 %v322
    %344 = vmatprep.subr.bf16.mxu0 0
    %345 = vmatpush1.bf16.msra.mxu0 %v323
    %346 = vmatprep.subr.bf16.mxu0 0
    %347 = vmatpush1.bf16.msra.mxu0 %v324
    %348 = vmatprep.subr.bf16.mxu0 0
    %349 = vmatpush1.bf16.msra.mxu0 %v325
    %350 = vmatprep.subr.bf16.mxu0 0
    %351 = vmatpush1.bf16.msra.mxu0 0
    %352 = vmatprep.subr.bf16.mxu0 0
    %353 = vmatpush1.bf16.msra.mxu0 0
    %354 = vmatprep.subr.bf16.mxu0 0
    %355 = vmatpush1.bf16.msra.mxu0 0
    %356 = vmatprep.subr.bf16.mxu0 0
    %357 = vmatpush1.bf16.msra.mxu0 0
    %358 = vmatprep.subr.bf16.mxu0 0
    %359 = vmatpush1.bf16.msra.mxu0 0
    %360 = vmatprep.subr.bf16.mxu0 0
    %361 = vmatpush1.bf16.msra.mxu0 0
    %362 = vmatprep.subr.bf16.mxu0 0
    %363 = vmatpush1.bf16.msra.mxu0 0
    %364 = vmatprep.subr.bf16.mxu0 0
    %365 = vmatpush1.bf16.msra.mxu0 0
    %366 = vmatprep.mubr.bf16.mxu0 0
    %367 = vmatmul.mubr.bf16.gmra.mrb[0].mxu0 %v281
    %v368 = vpop.f32.mrb[0].mxu0
    %v369 = vadd.f32 %v285, %v368
    %v370 = vpop.f32.mrb[0].mxu0
    %v371 = vpop.f32.mrb[0].mxu0
    %v372 = vpop.f32.mrb[0].mxu0
    %373 = vdwg.mxu0
    %374 = vmax.xlane.f32.xlu0 %v369
    %v375 = vpop.xlane.xlu0 %374
    %v376 = vsub.f32 %v369, %v375
    %v377 = vmul.f32 %v376, 1.442695
    %v378 = vpow.pop %v377
    %379 = vadd.xlane.f32.xlu0 %v378
    %v380 = vpop.xlane.xlu0 %379
    %v381 = vrcp.pop %v380
    %v382 = vmul.f32 %v378, %v381
    %383 = vst [vmem:[#allocation7] sm:$0xff] %v382
    // Predicated region
    $region18: #{tpu_custom_call.1} parent=1 // pred_check
      _
    $region19: #{tpu_custom_call.1} parent=1 // pred_check_branch
      %385 = sbr.rel (0) target = $region21
    $region20: #{tpu_custom_call.1} parent=1 // pred_region
      %s387 = ssub.s32 128, 128
      %388 = vsyncadd [#allocation4], %s387
      %s390 = sshll.u32 [#allocation7], 4
      %s391 = int_to_ptr.vmem [resolvable:$true] %s390
      %393 = dma.vmem_to_hbm [thread:$0]  %s391, 128, %s2, [#allocation4]
    $region21: #{tpu_custom_call.1} parent=1 // pred_fallthru
      _
    // Predicated region
    $region22: #{tpu_custom_call.1} parent=1 // pred_check
      _
    $region23: #{tpu_custom_call.1} parent=1 // pred_check_branch
      %395 = sbr.rel (0) target = $region25
    $region24: #{tpu_custom_call.1} parent=1 // pred_region
      %396 = dma.done [#allocation4], 128
    $region25: #{tpu_custom_call.1} parent=1 // pred_fallthru
      _
    %397 = vsyncpa [#allocation3], 1
    %398 = vsyncpa [#allocation6], 1
    %399 = vsyncpa [#allocation4], 1

</llo_original>
